<compile_context>
chip_gen: v6e
topology: v6e:2x2x1
jax: 0.10.0
libtpu: 0.0.40
codegen_flags: <defaults>
</compile_context>

<pallas_src>
import functools

import jax
import jax.numpy as jnp
from jax.experimental import pallas as pl
from jax.experimental.pallas import tpu as pltpu


def _round_up(x, m):
    return ((x + m - 1) // m) * m


def _dropout_randoms(key, shape):
    """Uniform int32 in [0, 2^24) — shared by the kernel wrapper and any reference."""
    bits = jax.random.bits(key, shape, dtype=jnp.uint32)
    return (bits >> 8).astype(jnp.int32)


def _word_embedding_kernel(ids_ref, table_ref, *rest, p):
    # ids_ref  : VMEM (TN, 1) int32
    # table_ref: VMEM (V, D) float32 (last row is the zero padding row)
    # rand_ref : VMEM (TN, D) int32 in [0, 2^24)       (only when p > 0)
    # out_ref  : VMEM (TN, D) float32
    if p > 0.0:
        rand_ref, out_ref = rest
    else:
        (out_ref,) = rest

    ids = ids_ref[...]                                  # (TN, 1)
    tn = ids.shape[0]
    v, d = table_ref.shape

    # One-hot gather on the MXU; fold the inverted-dropout scale into the one-hot so
    # the matmul absorbs the per-element multiply for free.
    scale = (1.0 / (1.0 - p)) if p > 0.0 else 1.0
    col = jax.lax.broadcasted_iota(jnp.int32, (tn, v), 1)
    onehot = jnp.where(ids == col, jnp.float32(scale), jnp.float32(0.0))   # (TN, V)
    emb = jnp.dot(onehot, table_ref[...],
                  preferred_element_type=jnp.float32,
                  precision=jax.lax.Precision.HIGHEST)                     # (TN, D)

    if p > 0.0:
        # Integer-threshold compare (no float convert/multiply on the VPU).
        thr = int(round(p * (1 << 24)))
        keep = rand_ref[...] >= thr
        emb = jnp.where(keep, emb, 0.0)

    out_ref[...] = emb.astype(out_ref.dtype)


def word_embedding_forward(ids, table, *, dropout_p=0.0, training=True,
                           rng_key=None, tile_n=256):
    """ids: (B, S) int32 in [0, ntoken]; table: (ntoken+1, D) float32.

    Equivalent to torch: emb = Embedding(padding_idx=ntoken)(ids); emb = Dropout(p)(emb).
    """
    b, s = ids.shape
    v, d = table.shape
    n = b * s
    p = float(dropout_p) if training else 0.0

    # Tile along N: default 256 (multiple of the MXU M-dim), clamped for tiny inputs,
    # always a multiple of 8 (sublane constraint).
    tn = min(int(tile_n), _round_up(n, 8))
    tn = _round_up(tn, 8)
    n_pad = _round_up(n, tn)
    grid = (n_pad // tn,)

    flat = ids.reshape(n).astype(jnp.int32)
    # Padding rows map to the padding index -> zero row of the table.
    flat = jnp.pad(flat, (0, n_pad - n), constant_values=v - 1).reshape(n_pad, 1)

    in_arrays = [flat, table]
    in_specs = [
        pl.BlockSpec((tn, 1), lambda i: (i, 0)),     # ids tile (streamed)
        pl.BlockSpec((v, d), lambda i: (0, 0)),      # full table, constant index_map
    ]

    if p > 0.0:
        if rng_key is None:
            rng_key = jax.random.PRNGKey(0)
        rand = _dropout_randoms(rng_key, (n, d))
        rand = jnp.pad(rand, ((0, n_pad - n), (0, 0)))   # padded rows get dropped; sliced off anyway
        in_arrays.append(rand)
        in_specs.append(pl.BlockSpec((tn, d), lambda i: (i, 0)))

    # Explicit VMEM budget with headroom (table kept resident + double-buffered tiles).
    table_bytes = v * d * 4
    tile_bytes = tn * (4 + d * 4 + (d * 4 if p > 0.0 else 0))
    vmem_limit = int(min(64 * 1024 * 1024,
                         max(16 * 1024 * 1024,
                             2 * table_bytes + 4 * tile_bytes + (2 << 20))))

    out = pl.pallas_call(
        functools.partial(_word_embedding_kernel, p=p),
        out_shape=jax.ShapeDtypeStruct((n_pad, d), table.dtype),
        grid=grid,
        in_specs=in_specs,
        out_specs=pl.BlockSpec((tn, d), lambda i: (i, 0)),
        compiler_params=pltpu.CompilerParams(
            dimension_semantics=("parallel",),
            vmem_limit_bytes=vmem_limit),
    )(*in_arrays)

    return out[:n].reshape(b, s, d)


if __name__ == "__main__":
    # Module hyperparameters (small, consistent with WordEmbedding.__init__):
    ntoken = 40        # vocab size; index `ntoken` is the padding row
    emb_dim = 128
    dropout_p = 0.1
    B, S = 2, 8        # batch of token-id sequences

    key = jax.random.PRNGKey(0)
    k_w, k_ids, k_drop = jax.random.split(key, 3)

    # nn.Embedding default init is N(0, 1); zero out the padding row.
    weight = jax.random.normal(k_w, (ntoken + 1, emb_dim), dtype=jnp.float32)
    weight = weight.at[ntoken].set(0.0)

    # Token ids in [0, ntoken]; force a couple of padding tokens.
    ids = jax.random.randint(k_ids, (B, S), 0, ntoken, dtype=jnp.int32)
    ids = ids.at[0, 0].set(ntoken).at[1, 3].set(ntoken)

    # --- Eval-mode pass (dropout identity) -> must match a pure-JAX gather. ---
    out_eval = word_embedding_forward(ids, weight, dropout_p=dropout_p,
                                      training=False)
    jax.block_until_ready(out_eval)
    ref = jnp.take(weight, ids, axis=0)
    assert out_eval.shape == (B, S, emb_dim)
    assert jnp.allclose(out_eval, ref, atol=1e-5), "embedding lookup mismatch"
    assert bool(jnp.all(out_eval[0, 0] == 0.0)) and bool(jnp.all(out_eval[1, 3] == 0.0))

    # --- Training-mode pass (inverted dropout, host-generated bits) -> exact ref. ---
    out_train = word_embedding_forward(ids, weight, dropout_p=dropout_p,
                                       training=True, rng_key=k_drop)
    jax.block_until_ready(out_train)
    thr = int(round(dropout_p * (1 << 24)))
    rand_ref = _dropout_randoms(k_drop, (B * S, emb_dim)).reshape(B, S, emb_dim)
    keep = rand_ref >= thr
    ref_train = jnp.where(keep, ref * (1.0 / (1.0 - dropout_p)), 0.0)
    assert out_train.shape == (B, S, emb_dim)
    assert jnp.allclose(out_train, ref_train, atol=1e-4, rtol=1e-5), "dropout mismatch"
    assert bool(jnp.all(out_train[0, 0] == 0.0)) and bool(jnp.all(out_train[1, 3] == 0.0))

    print("KERNEL_OK")
</pallas_src>

<mosaic_0001>
module attributes {stable_mosaic.version = 11 : i64} {
  func.func @_word_embedding_kernel(%arg0: i32, %arg1: memref<16x1xi32, #tpu.memory_space<vmem>>, %arg2: memref<41x128xf32, #tpu.memory_space<vmem>>, %arg3: memref<16x128xf32, #tpu.memory_space<vmem>>) attributes {dimension_semantics = [#tpu.dimension_semantics<parallel>], iteration_bounds = array<i64: 1>, scalar_prefetch = 0 : i64, scratch_operands = 0 : i64, tpu.core_type = #tpu.core_type<tc>, window_params = [{transform_indices = @transform_0, window_bounds = array<i64: 16, 1>}, {pipeline_mode = #tpu.pipeline_mode<synchronous>, transform_indices = @transform_1, window_bounds = array<i64: 41, 128>}, {transform_indices = @transform_2, window_bounds = array<i64: 16, 128>}]} {
    %c0 = arith.constant 0 : index
    %c0_0 = arith.constant 0 : index
    %0 = vector.load %arg1[%c0, %c0_0] : memref<16x1xi32, #tpu.memory_space<vmem>>, vector<16x1xi32>
    %1 = tpu.iota {dimensions = array<i32: 1>} : vector<16x41xi32>
    %2 = vector.broadcast %0 : vector<16x1xi32> to vector<16x41xi32>
    %3 = arith.cmpi eq, %2, %1 : vector<16x41xi32>
    %cst = arith.constant 1.000000e+00 : f32
    %cst_1 = arith.constant 0.000000e+00 : f32
    %4 = vector.broadcast %cst : f32 to vector<16x41xf32>
    %5 = vector.broadcast %cst_1 : f32 to vector<16x41xf32>
    %6 = arith.select %3, %4, %5 : vector<16x41xi1>, vector<16x41xf32>
    %c0_2 = arith.constant 0 : index
    %c0_3 = arith.constant 0 : index
    %7 = vector.load %arg2[%c0_2, %c0_3] : memref<41x128xf32, #tpu.memory_space<vmem>>, vector<41x128xf32>
    %cst_4 = arith.constant dense<0.000000e+00> : vector<16x128xf32>
    %8 = tpu.matmul %6, %7, %cst_4 {dimension_numbers = #tpu.dot_dimension_numbers<[1], [0], [0], [1], [0, 0, 1, 1], [], []>, precision = #tpu.contract_precision<fp32>} : vector<16x41xf32>, vector<41x128xf32>, vector<16x128xf32> -> vector<16x128xf32>
    %c0_5 = arith.constant 0 : index
    %c0_6 = arith.constant 0 : index
    %9 = vector.load %arg3[%c0_5, %c0_6] : memref<16x128xf32, #tpu.memory_space<vmem>>, vector<16x128xf32>
    tpu.vector_store %arg3[%c0_5, %c0_6], %8 {strides = array<i32>} : memref<16x128xf32, #tpu.memory_space<vmem>>, vector<16x128xf32>,
    return
  }
  func.func @transform_0(%arg0: i32) -> (i32, i32) {
    %c0_i32 = arith.constant 0 : i32
    %c0_i32_0 = arith.constant 0 : i32
    return %arg0, %c0_i32 : i32, i32
  }
  func.func @transform_1(%arg0: i32) -> (i32, i32) {
    %c0_i32 = arith.constant 0 : i32
    %c0_i32_0 = arith.constant 0 : i32
    %c0_i32_1 = arith.constant 0 : i32
    return %c0_i32, %c0_i32_0 : i32, i32
  }
  func.func @transform_2(%arg0: i32) -> (i32, i32) {
    %c0_i32 = arith.constant 0 : i32
    %c0_i32_0 = arith.constant 0 : i32
    return %arg0, %c0_i32 : i32, i32
  }
}

</mosaic_0001>

<llo_original>
// kernel: tpu_custom_call.1
$region0: #{tpu_custom_call.1}
  #allocation0 [shape = 'u32[]', space=smem, size = 0x4, offset = 0x4, fixed_abs, tag = 'smem constant byte address 0x4 - core index']
  #allocation1 [shape = 'u32[144,128]{1,0:T(1,128)}', space=vmem, size = 0x12000, scoped, tag = 'internal scratch']
  %s0 = inlined_call_operand.vmem [shape: s32[16,1], index: 0, kind: input, shape index: {}]
  %s1 = inlined_call_operand.hbm [shape: f32[41,128], index: 1, kind: input, shape index: {}]
  %s2 = inlined_call_operand.hbm [shape: f32[16,128], index: 2, kind: output, shape index: {}]
  %s3 = sld [smem:[#allocation0]]
  $region22: #{tpu_custom_call.1} parent=0
    _
  %s5 = ssub.s32 1, %s3
  %s6 = scalar_select 0, %s5, %s3
  $region1: #{tpu_custom_call.1} parent=0
    #allocation2 [shape = 'u8[24576]{0}', space=vmem, size = 0x6000, scoped, tag = 'input window, operand 1, single buffered']
    #allocation3 [shape = 's32[1]{0}', space=sflag, size = 0x4, scoped, tag = 'scoped memory for tpu_custom_call.1']
    #allocation4 [shape = 's32[1]{0}', space=sflag, size = 0x4, scoped, tag = 'scoped memory for tpu_custom_call.1']
    #allocation5 [shape = 'u8[8192]{0}', space=vmem, size = 0x2000, scoped, tag = 'output window, operand 0, single buffered']
    %7 = vsyncpa [#allocation3], 0
    %8 = vsyncpa [#allocation4], 0
    // Predicated region
    $region2: #{tpu_custom_call.1} parent=1 // pred_check
      _
    $region3: #{tpu_custom_call.1} parent=1 // pred_check_branch
      %10 = sbr.rel (0) target = $region5
    $region4: #{tpu_custom_call.1} parent=1 // pred_region
      _
    $region5: #{tpu_custom_call.1} parent=1 // pred_fallthru
      _
    // Predicated region
    $region6: #{tpu_custom_call.1} parent=1 // pred_check
      _
    $region7: #{tpu_custom_call.1} parent=1 // pred_check_branch
      %12 = sbr.rel (0) target = $region9
    $region8: #{tpu_custom_call.1} parent=1 // pred_region
      %s14 = ssub.s32 768, 768
      %15 = vsyncadd [#allocation3], %s14
      %s16 = sshll.u32 [#allocation2], 4
      %s17 = int_to_ptr.vmem [resolvable:$true] %s16
      %22 = dma.hbm_to_vmem [thread:$0]  %s1, 768, %s17, [#allocation3], 128, 128, 8
    $region9: #{tpu_custom_call.1} parent=1 // pred_fallthru
      _
    // Predicated region
    $region10: #{tpu_custom_call.1} parent=1 // pred_check
      _
    $region11: #{tpu_custom_call.1} parent=1 // pred_check_branch
      %24 = sbr.rel (0) target = $region13
    $region12: #{tpu_custom_call.1} parent=1 // pred_region
      %25 = dma.done [#allocation3], 768
    $region13: #{tpu_custom_call.1} parent=1 // pred_fallthru
      _
    %v26 = vld [vmem:[%s0] sm:$0xff]
    %v27 = vld [vmem:[%s0 + $0x8] sm:$0xff]
    %v28 = vlaneseq
    %v29 = vand.u32 %v28, 127
    %30 = vset.pattern.permute.xlu0 0
    %31 = vperm.xlu0 %30, %v26
    %v32 = vpop.permute.xlu0 %31
    %33 = vset.pattern.permute.xlu0 0
    %34 = vperm.xlu0 %33, %v27
    %v35 = vpop.permute.xlu0 %34
    %vm36 = vcmp.eq.s32.totalorder %v32, %v29
    %vm37 = vcmp.eq.s32.totalorder %v35, %v29
    %v38 = vsel %vm36, 1.0, 0.0
    %v39 = vsel %vm37, 1.0, 0.0
    %v40 = vld [vmem:[#allocation2] sm:$0xff]
    %v41 = vld [vmem:[#allocation2 + $0x8] sm:$0xff]
    %v42 = vld [vmem:[#allocation2 + $0x10] sm:$0xff]
    %v43 = vld [vmem:[#allocation2 + $0x18] sm:$0xff]
    %v44 = vld [vmem:[#allocation2 + $0x20] sm:$0xff]
    %v45 = vld [vmem:[#allocation2 + $0x28] sm:$0x1]
    %vm46 = vcmask 334848
    %v48 = vsel %vm46, %v38, 0
    %v51 = vsel %vm46, %v39, 0
    %vm53 = vcmask 1040384
    %v55 = vsel %vm53, %v45, 0
    %57 = vmatprep.subr.mxu0 0.0
    %58 = vmatpush1.msra.mxu0 0.0
    %59 = vmatprep.subr.mxu0 0.0
    %60 = vmatpush1.msra.mxu0 0.0
    %61 = vmatprep.subr.mxu0 0.0
    %62 = vmatpush1.msra.mxu0 0.0
    %63 = vmatprep.subr.mxu0 0.0
    %64 = vmatpush1.msra.mxu0 0.0
    %65 = vmatprep.subr.mxu0 0.0
    %66 = vmatpush1.msra.mxu0 0.0
    %67 = vmatprep.subr.mxu0 0.0
    %68 = vmatpush1.msra.mxu0 0.0
    %69 = vmatprep.subr.mxu0 0.0
    %70 = vmatpush1.msra.mxu0 0.0
    %71 = vmatprep.subr.mxu0 0.0
    %72 = vmatpush1.msra.mxu0 0.0
    %73 = vmatprep.subr.mxu0 0.0
    %74 = vmatpush1.msra.mxu0 0.0
    %75 = vmatprep.subr.mxu0 0.0
    %76 = vmatpush1.msra.mxu0 0.0
    %77 = vmatprep.subr.mxu0 0.0
    %v78 = vand.u32 %v55, 4294901760
    %79 = vmatpush1.msra.mxu0 %v78
    %80 = vmatprep.subr.mxu0 0.0
    %v81 = vand.u32 %v44, 4294901760
    %82 = vmatpush1.msra.mxu0 %v81
    %83 = vmatprep.subr.mxu0 0.0
    %v84 = vand.u32 %v43, 4294901760
    %85 = vmatpush1.msra.mxu0 %v84
    %86 = vmatprep.subr.mxu0 0.0
    %v87 = vand.u32 %v42, 4294901760
    %88 = vmatpush1.msra.mxu0 %v87
    %89 = vmatprep.subr.mxu0 0.0
    %v90 = vand.u32 %v41, 4294901760
    %91 = vmatpush1.msra.mxu0 %v90
    %92 = vmatprep.subr.mxu0 0.0
    %v93 = vand.u32 %v40, 4294901760
    %94 = vmatpush1.msra.mxu0 %v93
    %95 = vmatprep.subr.mxu0 0.0
    %96 = vmatpush2.msra.mxu0 0.0
    %97 = vmatprep.subr.mxu0 0.0
    %98 = vmatpush2.msra.mxu0 0.0
    %99 = vmatprep.subr.mxu0 0.0
    %100 = vmatpush2.msra.mxu0 0.0
    %101 = vmatprep.subr.mxu0 0.0
    %102 = vmatpush2.msra.mxu0 0.0
    %103 = vmatprep.subr.mxu0 0.0
    %104 = vmatpush2.msra.mxu0 0.0
    %105 = vmatprep.subr.mxu0 0.0
    %106 = vmatpush2.msra.mxu0 0.0
    %107 = vmatprep.subr.mxu0 0.0
    %108 = vmatpush2.msra.mxu0 0.0
    %109 = vmatprep.subr.mxu0 0.0
    %110 = vmatpush2.msra.mxu0 0.0
    %111 = vmatprep.subr.mxu0 0.0
    %112 = vmatpush2.msra.mxu0 0.0
    %113 = vmatprep.subr.mxu0 0.0
    %114 = vmatpush2.msra.mxu0 0.0
    %115 = vmatprep.subr.mxu0 0.0
    %116 = vmatpush2.msra.mxu0 0.0
    %117 = vmatprep.subr.mxu0 0.0
    %118 = vmatpush2.msra.mxu0 0.0
    %119 = vmatprep.subr.mxu0 0.0
    %120 = vmatpush2.msra.mxu0 0.0
    %121 = vmatprep.subr.mxu0 0.0
    %122 = vmatpush2.msra.mxu0 0.0
    %123 = vmatprep.subr.mxu0 0.0
    %124 = vmatpush2.msra.mxu0 0.0
    %125 = vmatprep.subr.mxu0 0.0
    %126 = vmatpush2.msra.mxu0 0.0
    %127 = vmatprep.mubr.f32.mxu0 0.0
    %v128 = vand.u32 %v48, 4294901760
    %v129 = vsub.f32 %v48, %v128
    %v130 = vand.u32 %v129, 4294901760
    %v131 = vsub.f32 %v129, %v130
    %v132 = vand.u32 %v131, 4294901760
    %133 = vmatmul.mubr.f32.gmra.mxu0 %v132
    %v134 = vpop.f32.mrf.mxu0
    %v135 = vadd.f32 0.0, %v134
    %v136 = vpop.f32.mrf.mxu0
    %137 = vmatprep.mubr.f32.mxu0 0.0
    %v138 = vand.u32 %v51, 4294901760
    %v139 = vsub.f32 %v51, %v138
    %v140 = vand.u32 %v139, 4294901760
    %v141 = vsub.f32 %v139, %v140
    %v142 = vand.u32 %v141, 4294901760
    %143 = vmatmul.mubr.f32.gmra.mxu0 %v142
    %v144 = vpop.f32.mrf.mxu0
    %v145 = vadd.f32 0.0, %v144
    %v146 = vpop.f32.mrf.mxu0
    %147 = vdwg.mxu0
    %148 = vmatprep.subr.mxu0 0.0
    %149 = vmatpush1.msra.mxu0 0.0
    %150 = vmatprep.subr.mxu0 0.0
    %151 = vmatpush1.msra.mxu0 0.0
    %152 = vmatprep.subr.mxu0 0.0
    %153 = vmatpush1.msra.mxu0 0.0
    %154 = vmatprep.subr.mxu0 0.0
    %155 = vmatpush1.msra.mxu0 0.0
    %156 = vmatprep.subr.mxu0 0.0
    %157 = vmatpush1.msra.mxu0 0.0
    %158 = vmatprep.subr.mxu0 0.0
    %159 = vmatpush1.msra.mxu0 0.0
    %160 = vmatprep.subr.mxu0 0.0
    %161 = vmatpush1.msra.mxu0 0.0
    %162 = vmatprep.subr.mxu0 0.0
    %163 = vmatpush1.msra.mxu0 0.0
    %164 = vmatprep.subr.mxu0 0.0
    %165 = vmatpush1.msra.mxu0 0.0
    %166 = vmatprep.subr.mxu0 0.0
    %167 = vmatpush1.msra.mxu0 0.0
    %168 = vmatprep.subr.mxu0 0.0
    %v169 = vand.u32 %v55, 4294901760
    %v170 = vsub.f32 %v55, %v169
    %v171 = vand.u32 %v170, 4294901760
    %v172 = vsub.f32 %v170, %v171
    %v173 = vand.u32 %v172, 4294901760
    %174 = vmatpush1.msra.mxu0 %v173
    %175 = vmatprep.subr.mxu0 0.0
    %v176 = vand.u32 %v44, 4294901760
    %v177 = vsub.f32 %v44, %v176
    %v178 = vand.u32 %v177, 4294901760
    %v179 = vsub.f32 %v177, %v178
    %v180 = vand.u32 %v179, 4294901760
    %181 = vmatpush1.msra.mxu0 %v180
    %182 = vmatprep.subr.mxu0 0.0
    %v183 = vand.u32 %v43, 4294901760
    %v184 = vsub.f32 %v43, %v183
    %v185 = vand.u32 %v184, 4294901760
    %v186 = vsub.f32 %v184, %v185
    %v187 = vand.u32 %v186, 4294901760
    %188 = vmatpush1.msra.mxu0 %v187
    %189 = vmatprep.subr.mxu0 0.0
    %v190 = vand.u32 %v42, 4294901760
    %v191 = vsub.f32 %v42, %v190
    %v192 = vand.u32 %v191, 4294901760
    %v193 = vsub.f32 %v191, %v192
    %v194 = vand.u32 %v193, 4294901760
    %195 = vmatpush1.msra.mxu0 %v194
    %196 = vmatprep.subr.mxu0 0.0
    %v197 = vand.u32 %v41, 4294901760
    %v198 = vsub.f32 %v41, %v197
    %v199 = vand.u32 %v198, 4294901760
    %v200 = vsub.f32 %v198, %v199
    %v201 = vand.u32 %v200, 4294901760
    %202 = vmatpush1.msra.mxu0 %v201
    %203 = vmatprep.subr.mxu0 0.0
    %v204 = vand.u32 %v40, 4294901760
    %v205 = vsub.f32 %v40, %v204
    %v206 = vand.u32 %v205, 4294901760
    %v207 = vsub.f32 %v205, %v206
    %v208 = vand.u32 %v207, 4294901760
    %209 = vmatpush1.msra.mxu0 %v208
    %210 = vmatprep.subr.mxu0 0.0
    %211 = vmatpush2.msra.mxu0 0.0
    %212 = vmatprep.subr.mxu0 0.0
    %213 = vmatpush2.msra.mxu0 0.0
    %214 = vmatprep.subr.mxu0 0.0
    %215 = vmatpush2.msra.mxu0 0.0
    %216 = vmatprep.subr.mxu0 0.0
    %217 = vmatpush2.msra.mxu0 0.0
    %218 = vmatprep.subr.mxu0 0.0
    %219 = vmatpush2.msra.mxu0 0.0
    %220 = vmatprep.subr.mxu0 0.0
    %221 = vmatpush2.msra.mxu0 0.0
    %222 = vmatprep.subr.mxu0 0.0
    %223 = vmatpush2.msra.mxu0 0.0
    %224 = vmatprep.subr.mxu0 0.0
    %225 = vmatpush2.msra.mxu0 0.0
    %226 = vmatprep.subr.mxu0 0.0
    %227 = vmatpush2.msra.mxu0 0.0
    %228 = vmatprep.subr.mxu0 0.0
    %229 = vmatpush2.msra.mxu0 0.0
    %230 = vmatprep.subr.mxu0 0.0
    %231 = vmatpush2.msra.mxu0 0.0
    %232 = vmatprep.subr.mxu0 0.0
    %233 = vmatpush2.msra.mxu0 0.0
    %234 = vmatprep.subr.mxu0 0.0
    %235 = vmatpush2.msra.mxu0 0.0
    %236 = vmatprep.subr.mxu0 0.0
    %237 = vmatpush2.msra.mxu0 0.0
    %238 = vmatprep.subr.mxu0 0.0
    %239 = vmatpush2.msra.mxu0 0.0
    %240 = vmatprep.subr.mxu0 0.0
    %241 = vmatpush2.msra.mxu0 0.0
    %242 = vmatprep.mubr.f32.mxu0 0.0
    %v243 = vand.u32 %v48, 4294901760
    %244 = vmatmul.mubr.f32.gmra.mxu0 %v243
    %v245 = vpop.f32.mrf.mxu0
    %v246 = vadd.f32 %v135, %v245
    %v247 = vpop.f32.mrf.mxu0
    %248 = vmatprep.mubr.f32.mxu0 0.0
    %v249 = vand.u32 %v51, 4294901760
    %250 = vmatmul.mubr.f32.gmra.mxu0 %v249
    %v251 = vpop.f32.mrf.mxu0
    %v252 = vadd.f32 %v145, %v251
    %v253 = vpop.f32.mrf.mxu0
    %254 = vdwg.mxu0
    %255 = vmatprep.subr.mxu0 0.0
    %256 = vmatpush1.msra.mxu0 0.0
    %257 = vmatprep.subr.mxu0 0.0
    %258 = vmatpush1.msra.mxu0 0.0
    %259 = vmatprep.subr.mxu0 0.0
    %260 = vmatpush1.msra.mxu0 0.0
    %261 = vmatprep.subr.mxu0 0.0
    %262 = vmatpush1.msra.mxu0 0.0
    %263 = vmatprep.subr.mxu0 0.0
    %264 = vmatpush1.msra.mxu0 0.0
    %265 = vmatprep.subr.mxu0 0.0
    %266 = vmatpush1.msra.mxu0 0.0
    %267 = vmatprep.subr.mxu0 0.0
    %268 = vmatpush1.msra.mxu0 0.0
    %269 = vmatprep.subr.mxu0 0.0
    %270 = vmatpush1.msra.mxu0 0.0
    %271 = vmatprep.subr.mxu0 0.0
    %272 = vmatpush1.msra.mxu0 0.0
    %273 = vmatprep.subr.mxu0 0.0
    %274 = vmatpush1.msra.mxu0 0.0
    %275 = vmatprep.subr.mxu0 0.0
    %v276 = vand.u32 %v55, 4294901760
    %v277 = vsub.f32 %v55, %v276
    %278 = vmatpush1.msra.mxu0 %v277
    %279 = vmatprep.subr.mxu0 0.0
    %v280 = vand.u32 %v44, 4294901760
    %v281 = vsub.f32 %v44, %v280
    %282 = vmatpush1.msra.mxu0 %v281
    %283 = vmatprep.subr.mxu0 0.0
    %v284 = vand.u32 %v43, 4294901760
    %v285 = vsub.f32 %v43, %v284
    %286 = vmatpush1.msra.mxu0 %v285
    %287 = vmatprep.subr.mxu0 0.0
    %v288 = vand.u32 %v42, 4294901760
    %v289 = vsub.f32 %v42, %v288
    %290 = vmatpush1.msra.mxu0 %v289
    %291 = vmatprep.subr.mxu0 0.0
    %v292 = vand.u32 %v41, 4294901760
    %v293 = vsub.f32 %v41, %v292
    %294 = vmatpush1.msra.mxu0 %v293
    %295 = vmatprep.subr.mxu0 0.0
    %v296 = vand.u32 %v40, 4294901760
    %v297 = vsub.f32 %v40, %v296
    %298 = vmatpush1.msra.mxu0 %v297
    %299 = vmatprep.subr.mxu0 0.0
    %300 = vmatpush2.msra.mxu0 0.0
    %301 = vmatprep.subr.mxu0 0.0
    %302 = vmatpush2.msra.mxu0 0.0
    %303 = vmatprep.subr.mxu0 0.0
    %304 = vmatpush2.msra.mxu0 0.0
    %305 = vmatprep.subr.mxu0 0.0
    %306 = vmatpush2.msra.mxu0 0.0
    %307 = vmatprep.subr.mxu0 0.0
    %308 = vmatpush2.msra.mxu0 0.0
    %309 = vmatprep.subr.mxu0 0.0
    %310 = vmatpush2.msra.mxu0 0.0
    %311 = vmatprep.subr.mxu0 0.0
    %312 = vmatpush2.msra.mxu0 0.0
    %313 = vmatprep.subr.mxu0 0.0
    %314 = vmatpush2.msra.mxu0 0.0
    %315 = vmatprep.subr.mxu0 0.0
    %316 = vmatpush2.msra.mxu0 0.0
    %317 = vmatprep.subr.mxu0 0.0
    %318 = vmatpush2.msra.mxu0 0.0
    %319 = vmatprep.subr.mxu0 0.0
    %320 = vmatpush2.msra.mxu0 0.0
    %321 = vmatprep.subr.mxu0 0.0
    %322 = vmatpush2.msra.mxu0 0.0
    %323 = vmatprep.subr.mxu0 0.0
    %324 = vmatpush2.msra.mxu0 0.0
    %325 = vmatprep.subr.mxu0 0.0
    %326 = vmatpush2.msra.mxu0 0.0
    %327 = vmatprep.subr.mxu0 0.0
    %328 = vmatpush2.msra.mxu0 0.0
    %329 = vmatprep.subr.mxu0 0.0
    %330 = vmatpush2.msra.mxu0 0.0
    %331 = vmatprep.mubr.f32.mxu0 0.0
    %v332 = vand.u32 %v48, 4294901760
    %v333 = vsub.f32 %v48, %v332
    %334 = vmatmul.mubr.f32.gmra.mxu0 %v333
    %v335 = vpop.f32.mrf.mxu0
    %v336 = vadd.f32 %v246, %v335
    %v337 = vpop.f32.mrf.mxu0
    %338 = vmatprep.mubr.f32.mxu0 0.0
    %v339 = vand.u32 %v51, 4294901760
    %v340 = vsub.f32 %v51, %v339
    %341 = vmatmul.mubr.f32.gmra.mxu0 %v340
    %v342 = vpop.f32.mrf.mxu0
    %v343 = vadd.f32 %v252, %v342
    %v344 = vpop.f32.mrf.mxu0
    %345 = vdwg.mxu0
    %346 = vmatprep.subr.mxu0 0.0
    %347 = vmatpush1.msra.mxu0 0.0
    %348 = vmatprep.subr.mxu0 0.0
    %349 = vmatpush1.msra.mxu0 0.0
    %350 = vmatprep.subr.mxu0 0.0
    %351 = vmatpush1.msra.mxu0 0.0
    %352 = vmatprep.subr.mxu0 0.0
    %353 = vmatpush1.msra.mxu0 0.0
    %354 = vmatprep.subr.mxu0 0.0
    %355 = vmatpush1.msra.mxu0 0.0
    %356 = vmatprep.subr.mxu0 0.0
    %357 = vmatpush1.msra.mxu0 0.0
    %358 = vmatprep.subr.mxu0 0.0
    %359 = vmatpush1.msra.mxu0 0.0
    %360 = vmatprep.subr.mxu0 0.0
    %361 = vmatpush1.msra.mxu0 0.0
    %362 = vmatprep.subr.mxu0 0.0
    %363 = vmatpush1.msra.mxu0 0.0
    %364 = vmatprep.subr.mxu0 0.0
    %365 = vmatpush1.msra.mxu0 0.0
    %366 = vmatprep.subr.mxu0 0.0
    %v367 = vand.u32 %v55, 4294901760
    %368 = vmatpush1.msra.mxu0 %v367
    %369 = vmatprep.subr.mxu0 0.0
    %v370 = vand.u32 %v44, 4294901760
    %371 = vmatpush1.msra.mxu0 %v370
    %372 = vmatprep.subr.mxu0 0.0
    %v373 = vand.u32 %v43, 4294901760
    %374 = vmatpush1.msra.mxu0 %v373
    %375 = vmatprep.subr.mxu0 0.0
    %v376 = vand.u32 %v42, 4294901760
    %377 = vmatpush1.msra.mxu0 %v376
    %378 = vmatprep.subr.mxu0 0.0
    %v379 = vand.u32 %v41, 4294901760
    %380 = vmatpush1.msra.mxu0 %v379
    %381 = vmatprep.subr.mxu0 0.0
    %v382 = vand.u32 %v40, 4294901760
    %383 = vmatpush1.msra.mxu0 %v382
    %384 = vmatprep.subr.mxu0 0.0
    %385 = vmatpush2.msra.mxu0 0.0
    %386 = vmatprep.subr.mxu0 0.0
    %387 = vmatpush2.msra.mxu0 0.0
    %388 = vmatprep.subr.mxu0 0.0
    %389 = vmatpush2.msra.mxu0 0.0
    %390 = vmatprep.subr.mxu0 0.0
    %391 = vmatpush2.msra.mxu0 0.0
    %392 = vmatprep.subr.mxu0 0.0
    %393 = vmatpush2.msra.mxu0 0.0
    %394 = vmatprep.subr.mxu0 0.0
    %395 = vmatpush2.msra.mxu0 0.0
    %396 = vmatprep.subr.mxu0 0.0
    %397 = vmatpush2.msra.mxu0 0.0
    %398 = vmatprep.subr.mxu0 0.0
    %399 = vmatpush2.msra.mxu0 0.0
    %400 = vmatprep.subr.mxu0 0.0
    %401 = vmatpush2.msra.mxu0 0.0
    %402 = vmatprep.subr.mxu0 0.0
    %403 = vmatpush2.msra.mxu0 0.0
    %404 = vmatprep.subr.mxu0 0.0
    %405 = vmatpush2.msra.mxu0 0.0
    %406 = vmatprep.subr.mxu0 0.0
    %407 = vmatpush2.msra.mxu0 0.0
    %408 = vmatprep.subr.mxu0 0.0
    %409 = vmatpush2.msra.mxu0 0.0
    %410 = vmatprep.subr.mxu0 0.0
    %411 = vmatpush2.msra.mxu0 0.0
    %412 = vmatprep.subr.mxu0 0.0
    %413 = vmatpush2.msra.mxu0 0.0
    %414 = vmatprep.subr.mxu0 0.0
    %415 = vmatpush2.msra.mxu0 0.0
    %416 = vmatprep.mubr.f32.mxu0 0.0
    %v417 = vand.u32 %v48, 4294901760
    %v418 = vsub.f32 %v48, %v417
    %v419 = vand.u32 %v418, 4294901760
    %420 = vmatmul.mubr.f32.gmra.mxu0 %v419
    %v421 = vpop.f32.mrf.mxu0
    %v422 = vadd.f32 %v336, %v421
    %v423 = vpop.f32.mrf.mxu0
    %424 = vmatprep.mubr.f32.mxu0 0.0
    %v425 = vand.u32 %v51, 4294901760
    %v426 = vsub.f32 %v51, %v425
    %v427 = vand.u32 %v426, 4294901760
    %428 = vmatmul.mubr.f32.gmra.mxu0 %v427
    %v429 = vpop.f32.mrf.mxu0
    %v430 = vadd.f32 %v343, %v429
    %v431 = vpop.f32.mrf.mxu0
    %432 = vdwg.mxu0
    %433 = vmatprep.subr.mxu0 0.0
    %434 = vmatpush1.msra.mxu0 0.0
    %435 = vmatprep.subr.mxu0 0.0
    %436 = vmatpush1.msra.mxu0 0.0
    %437 = vmatprep.subr.mxu0 0.0
    %438 = vmatpush1.msra.mxu0 0.0
    %439 = vmatprep.subr.mxu0 0.0
    %440 = vmatpush1.msra.mxu0 0.0
    %441 = vmatprep.subr.mxu0 0.0
    %442 = vmatpush1.msra.mxu0 0.0
    %443 = vmatprep.subr.mxu0 0.0
    %444 = vmatpush1.msra.mxu0 0.0
    %445 = vmatprep.subr.mxu0 0.0
    %446 = vmatpush1.msra.mxu0 0.0
    %447 = vmatprep.subr.mxu0 0.0
    %448 = vmatpush1.msra.mxu0 0.0
    %449 = vmatprep.subr.mxu0 0.0
    %450 = vmatpush1.msra.mxu0 0.0
    %451 = vmatprep.subr.mxu0 0.0
    %452 = vmatpush1.msra.mxu0 0.0
    %453 = vmatprep.subr.mxu0 0.0
    %v454 = vand.u32 %v55, 4294901760
    %v455 = vsub.f32 %v55, %v454
    %v456 = vand.u32 %v455, 4294901760
    %457 = vmatpush1.msra.mxu0 %v456
    %458 = vmatprep.subr.mxu0 0.0
    %v459 = vand.u32 %v44, 4294901760
    %v460 = vsub.f32 %v44, %v459
    %v461 = vand.u32 %v460, 4294901760
    %462 = vmatpush1.msra.mxu0 %v461
    %463 = vmatprep.subr.mxu0 0.0
    %v464 = vand.u32 %v43, 4294901760
    %v465 = vsub.f32 %v43, %v464
    %v466 = vand.u32 %v465, 4294901760
    %467 = vmatpush1.msra.mxu0 %v466
    %468 = vmatprep.subr.mxu0 0.0
    %v469 = vand.u32 %v42, 4294901760
    %v470 = vsub.f32 %v42, %v469
    %v471 = vand.u32 %v470, 4294901760
    %472 = vmatpush1.msra.mxu0 %v471
    %473 = vmatprep.subr.mxu0 0.0
    %v474 = vand.u32 %v41, 4294901760
    %v475 = vsub.f32 %v41, %v474
    %v476 = vand.u32 %v475, 4294901760
    %477 = vmatpush1.msra.mxu0 %v476
    %478 = vmatprep.subr.mxu0 0.0
    %v479 = vand.u32 %v40, 4294901760
    %v480 = vsub.f32 %v40, %v479
    %v481 = vand.u32 %v480, 4294901760
    %482 = vmatpush1.msra.mxu0 %v481
    %483 = vmatprep.subr.mxu0 0.0
    %484 = vmatpush2.msra.mxu0 0.0
    %485 = vmatprep.subr.mxu0 0.0
    %486 = vmatpush2.msra.mxu0 0.0
    %487 = vmatprep.subr.mxu0 0.0
    %488 = vmatpush2.msra.mxu0 0.0
    %489 = vmatprep.subr.mxu0 0.0
    %490 = vmatpush2.msra.mxu0 0.0
    %491 = vmatprep.subr.mxu0 0.0
    %492 = vmatpush2.msra.mxu0 0.0
    %493 = vmatprep.subr.mxu0 0.0
    %494 = vmatpush2.msra.mxu0 0.0
    %495 = vmatprep.subr.mxu0 0.0
    %496 = vmatpush2.msra.mxu0 0.0
    %497 = vmatprep.subr.mxu0 0.0
    %498 = vmatpush2.msra.mxu0 0.0
    %499 = vmatprep.subr.mxu0 0.0
    %500 = vmatpush2.msra.mxu0 0.0
    %501 = vmatprep.subr.mxu0 0.0
    %502 = vmatpush2.msra.mxu0 0.0
    %503 = vmatprep.subr.mxu0 0.0
    %504 = vmatpush2.msra.mxu0 0.0
    %505 = vmatprep.subr.mxu0 0.0
    %506 = vmatpush2.msra.mxu0 0.0
    %507 = vmatprep.subr.mxu0 0.0
    %508 = vmatpush2.msra.mxu0 0.0
    %509 = vmatprep.subr.mxu0 0.0
    %510 = vmatpush2.msra.mxu0 0.0
    %511 = vmatprep.subr.mxu0 0.0
    %512 = vmatpush2.msra.mxu0 0.0
    %513 = vmatprep.subr.mxu0 0.0
    %514 = vmatpush2.msra.mxu0 0.0
    %515 = vmatprep.mubr.f32.mxu0 0.0
    %v516 = vand.u32 %v48, 4294901760
    %517 = vmatmul.mubr.f32.gmra.mxu0 %v516
    %v518 = vpop.f32.mrf.mxu0
    %v519 = vadd.f32 %v422, %v518
    %v520 = vpop.f32.mrf.mxu0
    %521 = vmatprep.mubr.f32.mxu0 0.0
    %v522 = vand.u32 %v51, 4294901760
    %523 = vmatmul.mubr.f32.gmra.mxu0 %v522
    %v524 = vpop.f32.mrf.mxu0
    %v525 = vadd.f32 %v430, %v524
    %v526 = vpop.f32.mrf.mxu0
    %527 = vdwg.mxu0
    %528 = vmatprep.subr.mxu0 0.0
    %529 = vmatpush1.msra.mxu0 0.0
    %530 = vmatprep.subr.mxu0 0.0
    %531 = vmatpush1.msra.mxu0 0.0
    %532 = vmatprep.subr.mxu0 0.0
    %533 = vmatpush1.msra.mxu0 0.0
    %534 = vmatprep.subr.mxu0 0.0
    %535 = vmatpush1.msra.mxu0 0.0
    %536 = vmatprep.subr.mxu0 0.0
    %537 = vmatpush1.msra.mxu0 0.0
    %538 = vmatprep.subr.mxu0 0.0
    %539 = vmatpush1.msra.mxu0 0.0
    %540 = vmatprep.subr.mxu0 0.0
    %541 = vmatpush1.msra.mxu0 0.0
    %542 = vmatprep.subr.mxu0 0.0
    %543 = vmatpush1.msra.mxu0 0.0
    %544 = vmatprep.subr.mxu0 0.0
    %545 = vmatpush1.msra.mxu0 0.0
    %546 = vmatprep.subr.mxu0 0.0
    %547 = vmatpush1.msra.mxu0 0.0
    %548 = vmatprep.subr.mxu0 0.0
    %v549 = vand.u32 %v55, 4294901760
    %550 = vmatpush1.msra.mxu0 %v549
    %551 = vmatprep.subr.mxu0 0.0
    %v552 = vand.u32 %v44, 4294901760
    %553 = vmatpush1.msra.mxu0 %v552
    %554 = vmatprep.subr.mxu0 0.0
    %v555 = vand.u32 %v43, 4294901760
    %556 = vmatpush1.msra.mxu0 %v555
    %557 = vmatprep.subr.mxu0 0.0
    %v558 = vand.u32 %v42, 4294901760
    %559 = vmatpush1.msra.mxu0 %v558
    %560 = vmatprep.subr.mxu0 0.0
    %v561 = vand.u32 %v41, 4294901760
    %562 = vmatpush1.msra.mxu0 %v561
    %563 = vmatprep.subr.mxu0 0.0
    %v564 = vand.u32 %v40, 4294901760
    %565 = vmatpush1.msra.mxu0 %v564
    %566 = vmatprep.subr.mxu0 0.0
    %567 = vmatpush2.msra.mxu0 0.0
    %568 = vmatprep.subr.mxu0 0.0
    %569 = vmatpush2.msra.mxu0 0.0
    %570 = vmatprep.subr.mxu0 0.0
    %571 = vmatpush2.msra.mxu0 0.0
    %572 = vmatprep.subr.mxu0 0.0
    %573 = vmatpush2.msra.mxu0 0.0
    %574 = vmatprep.subr.mxu0 0.0
    %575 = vmatpush2.msra.mxu0 0.0
    %576 = vmatprep.subr.mxu0 0.0
    %577 = vmatpush2.msra.mxu0 0.0
    %578 = vmatprep.subr.mxu0 0.0
    %579 = vmatpush2.msra.mxu0 0.0
    %580 = vmatprep.subr.mxu0 0.0
    %581 = vmatpush2.msra.mxu0 0.0
    %582 = vmatprep.subr.mxu0 0.0
    %583 = vmatpush2.msra.mxu0 0.0
    %584 = vmatprep.subr.mxu0 0.0
    %585 = vmatpush2.msra.mxu0 0.0
    %586 = vmatprep.subr.mxu0 0.0
    %587 = vmatpush2.msra.mxu0 0.0
    %588 = vmatprep.subr.mxu0 0.0
    %589 = vmatpush2.msra.mxu0 0.0
    %590 = vmatprep.subr.mxu0 0.0
    %591 = vmatpush2.msra.mxu0 0.0
    %592 = vmatprep.subr.mxu0 0.0
    %593 = vmatpush2.msra.mxu0 0.0
    %594 = vmatprep.subr.mxu0 0.0
    %595 = vmatpush2.msra.mxu0 0.0
    %596 = vmatprep.subr.mxu0 0.0
    %597 = vmatpush2.msra.mxu0 0.0
    %598 = vmatprep.mubr.f32.mxu0 0.0
    %v599 = vand.u32 %v48, 4294901760
    %600 = vmatmul.mubr.f32.gmra.mxu0 %v599
    %v601 = vpop.f32.mrf.mxu0
    %v602 = vadd.f32 %v519, %v601
    %v603 = vpop.f32.mrf.mxu0
    %604 = vmatprep.mubr.f32.mxu0 0.0
    %v605 = vand.u32 %v51, 4294901760
    %606 = vmatmul.mubr.f32.gmra.mxu0 %v605
    %v607 = vpop.f32.mrf.mxu0
    %v608 = vadd.f32 %v525, %v607
    %v609 = vpop.f32.mrf.mxu0
    %610 = vdwg.mxu0
    %611 = vst [vmem:[#allocation5] sm:$0xff] %v602
    %612 = vst [vmem:[#allocation5 + $0x8] sm:$0xff] %v608
    // Predicated region
    $region14: #{tpu_custom_call.1} parent=1 // pred_check
      _
    $region15: #{tpu_custom_call.1} parent=1 // pred_check_branch
      %614 = sbr.rel (0) target = $region17
    $region16: #{tpu_custom_call.1} parent=1 // pred_region
      %s616 = ssub.s32 256, 256
      %617 = vsyncadd [#allocation4], %s616
      %s618 = sshll.u32 [#allocation5], 4
      %s619 = int_to_ptr.vmem [resolvable:$true] %s618
      %624 = dma.vmem_to_hbm [thread:$0]  %s619, 256, %s2, [#allocation4], 128, 128, 8
    $region17: #{tpu_custom_call.1} parent=1 // pred_fallthru
      _
    // Predicated region
    $region18: #{tpu_custom_call.1} parent=1 // pred_check
      _
    $region19: #{tpu_custom_call.1} parent=1 // pred_check_branch
      %626 = sbr.rel (0) target = $region21
    $region20: #{tpu_custom_call.1} parent=1 // pred_region
      %627 = dma.done [#allocation4], 256
    $region21: #{tpu_custom_call.1} parent=1 // pred_fallthru
      _
    %628 = vsyncpa [#allocation3], 1
    %629 = vsyncpa [#allocation4], 1

</llo_original>
